<compile_context>
chip_gen: v5e
topology: v5e:2x2
jax: 0.10.0
libtpu: 0.0.40
codegen_flags: <defaults>
</compile_context>

<pallas_src>
from functools import partial

import jax
import jax.numpy as jnp
from jax.experimental import pallas as pl
from jax.experimental.pallas import tpu as pltpu


def mlp_kernel(x_ref, w1_ref, b1_ref, w2_ref, b2_ref, w3_ref, b3_ref, o_ref):
    x = x_ref[...]                                                      # (1, TB)

    # Layer 1: Linear(1, 16). K=1 is a degenerate matmul -> do it on the VPU as an
    # outer-product broadcast: (16,1) * (1,TB) -> (16,TB).
    h1 = jnp.maximum(w1_ref[...] * x + b1_ref[...], 0.0)               # (16, TB)

    # Layer 2: Linear(16, 32) on the MXU with lane-dense N = TB.
    h2 = jnp.dot(w2_ref[...], h1, preferred_element_type=jnp.float32)  # (32, TB)
    h2 = jnp.maximum(h2 + b2_ref[...], 0.0)

    # Layer 3: Linear(32, 1) on the MXU; output stays lane-dense (1, TB).
    y = jnp.dot(w3_ref[...], h2, preferred_element_type=jnp.float32)   # (1, TB)
    o_ref[...] = y + b3_ref[...]


@partial(jax.jit, static_argnames=("tb_max",))
def simple_interpolator_forward(x, params, *, tb_max=2048):
    """x: (B, 1) float32. params: PyTorch-shaped (out, in) weights, (out, 1) biases."""
    B = x.shape[0]
    w1, b1 = params["w1"], params["b1"]      # (16, 1), (16, 1)
    w2, b2 = params["w2"], params["b2"]      # (32, 16), (32, 1)
    w3, b3 = params["w3"], params["b3"]      # (1, 32), (1, 1)

    # Adaptive lane tile: multiple of 128, no bigger than needed, capped at tb_max.
    b128 = ((B + 127) // 128) * 128
    tb = min(tb_max, b128)
    n_tiles = pl.cdiv(B, tb)
    bp = n_tiles * tb

    # Transpose to lane-dense layout and pad batch to a tile multiple.
    xt = x.reshape(B, 1).T                   # (1, B)
    if bp != B:
        xt = jnp.pad(xt, ((0, 0), (0, bp - B)))

    # Weights/biases: full-array blocks with constant index maps -> VMEM-resident
    # across all batch tiles (fetched once, never re-DMA'd).
    resident = lambda arr: pl.BlockSpec(arr.shape, lambda i: (0, 0))

    yt = pl.pallas_call(
        mlp_kernel,
        out_shape=jax.ShapeDtypeStruct((1, bp), jnp.float32),
        grid=(n_tiles,),
        in_specs=[
            pl.BlockSpec((1, tb), lambda i: (0, i)),   # x tile (lane-dense)
            resident(w1), resident(b1),
            resident(w2), resident(b2),
            resident(w3), resident(b3),
        ],
        out_specs=pl.BlockSpec((1, tb), lambda i: (0, i)),
        compiler_params=pltpu.CompilerParams(
            # Batch tiles are independent: shard across v7x's two TensorCores
            # (no-op on v5e/v6e). Tiny per-tile VMEM -> no vmem_limit_bytes needed.
            dimension_semantics=("parallel",),
        ),
    )(xt, w1, b1, w2, b2, w3, b3)

    return yt[:, :B].T                        # back to (B, 1)


def init_params(key):
    """Deterministic init mirroring nn.Linear: W (out, in), b (out,) -> stored (out, 1)."""
    ks = jax.random.split(key, 6)

    def linear(kw, kb, fan_in, fan_out):
        bound = 1.0 / jnp.sqrt(fan_in)
        w = jax.random.uniform(kw, (fan_out, fan_in), jnp.float32, -bound, bound)
        b = jax.random.uniform(kb, (fan_out,), jnp.float32, -bound, bound)
        return w, b.reshape(fan_out, 1)

    w1, b1 = linear(ks[0], ks[1], 1, 16)
    w2, b2 = linear(ks[2], ks[3], 16, 32)
    w3, b3 = linear(ks[4], ks[5], 32, 1)
    return dict(w1=w1, b1=b1, w2=w2, b2=b2, w3=w3, b3=b3)


def reference_forward(x, p):
    h1 = jnp.maximum(x @ p["w1"].T + p["b1"].reshape(1, -1), 0.0)
    h2 = jnp.maximum(h1 @ p["w2"].T + p["b2"].reshape(1, -1), 0.0)
    return h2 @ p["w3"].T + p["b3"].reshape(1, -1)


if __name__ == "__main__":
    key = jax.random.PRNGKey(0)
    k_param, k_x = jax.random.split(key)

    params = init_params(k_param)
    x = jax.random.normal(k_x, (8, 1), jnp.float32)   # batch=8, feature=1

    out = simple_interpolator_forward(x, params)
    out = jax.block_until_ready(out)

    ref = reference_forward(x, params)
    assert out.shape == (8, 1) and out.dtype == jnp.float32
    assert jnp.allclose(out, ref, atol=1e-5, rtol=1e-5)

    print("KERNEL_OK")
</pallas_src>

<mosaic_0001>
module attributes {stable_mosaic.version = 11 : i64} {
  func.func @mlp_kernel(%arg0: i32, %arg1: memref<1x128xf32, #tpu.memory_space<vmem>>, %arg2: memref<16x1xf32, #tpu.memory_space<vmem>>, %arg3: memref<16x1xf32, #tpu.memory_space<vmem>>, %arg4: memref<32x16xf32, #tpu.memory_space<vmem>>, %arg5: memref<32x1xf32, #tpu.memory_space<vmem>>, %arg6: memref<1x32xf32, #tpu.memory_space<vmem>>, %arg7: memref<1x1xf32, #tpu.memory_space<vmem>>, %arg8: memref<1x128xf32, #tpu.memory_space<vmem>>) attributes {dimension_semantics = [#tpu.dimension_semantics<parallel>], iteration_bounds = array<i64: 1>, scalar_prefetch = 0 : i64, scratch_operands = 0 : i64, tpu.core_type = #tpu.core_type<tc>, window_params = [{transform_indices = @transform_0, window_bounds = array<i64: 1, 128>}, {pipeline_mode = #tpu.pipeline_mode<synchronous>, transform_indices = @transform_1, window_bounds = array<i64: 16, 1>}, {pipeline_mode = #tpu.pipeline_mode<synchronous>, transform_indices = @transform_2, window_bounds = array<i64: 16, 1>}, {pipeline_mode = #tpu.pipeline_mode<synchronous>, transform_indices = @transform_3, window_bounds = array<i64: 32, 16>}, {pipeline_mode = #tpu.pipeline_mode<synchronous>, transform_indices = @transform_4, window_bounds = array<i64: 32, 1>}, {pipeline_mode = #tpu.pipeline_mode<synchronous>, transform_indices = @transform_5, window_bounds = array<i64: 1, 32>}, {pipeline_mode = #tpu.pipeline_mode<synchronous>, transform_indices = @transform_6, window_bounds = array<i64: 1, 1>}, {transform_indices = @transform_7, window_bounds = array<i64: 1, 128>}]} {
    %c0 = arith.constant 0 : index
    %c0_0 = arith.constant 0 : index
    %0 = vector.load %arg1[%c0, %c0_0] : memref<1x128xf32, #tpu.memory_space<vmem>>, vector<1x128xf32>
    %c0_1 = arith.constant 0 : index
    %c0_2 = arith.constant 0 : index
    %1 = vector.load %arg2[%c0_1, %c0_2] : memref<16x1xf32, #tpu.memory_space<vmem>>, vector<16x1xf32>
    %2 = vector.broadcast %1 : vector<16x1xf32> to vector<16x128xf32>
    %3 = vector.broadcast %0 : vector<1x128xf32> to vector<16x128xf32>
    %4 = arith.mulf %2, %3 : vector<16x128xf32>
    %c0_3 = arith.constant 0 : index
    %c0_4 = arith.constant 0 : index
    %5 = vector.load %arg3[%c0_3, %c0_4] : memref<16x1xf32, #tpu.memory_space<vmem>>, vector<16x1xf32>
    %6 = vector.broadcast %5 : vector<16x1xf32> to vector<16x128xf32>
    %7 = arith.addf %4, %6 : vector<16x128xf32>
    %cst = arith.constant 0.000000e+00 : f32
    %8 = vector.broadcast %cst : f32 to vector<16x128xf32>
    %9 = arith.maximumf %7, %8 : vector<16x128xf32>
    %c0_5 = arith.constant 0 : index
    %c0_6 = arith.constant 0 : index
    %10 = vector.load %arg4[%c0_5, %c0_6] : memref<32x16xf32, #tpu.memory_space<vmem>>, vector<32x16xf32>
    %cst_7 = arith.constant dense<0.000000e+00> : vector<32x128xf32>
    %11 = tpu.matmul %10, %9, %cst_7 {dimension_numbers = #tpu.dot_dimension_numbers<[1], [0], [0], [1], [0, 0, 1, 1], [], []>} : vector<32x16xf32>, vector<16x128xf32>, vector<32x128xf32> -> vector<32x128xf32>
    %c0_8 = arith.constant 0 : index
    %c0_9 = arith.constant 0 : index
    %12 = vector.load %arg5[%c0_8, %c0_9] : memref<32x1xf32, #tpu.memory_space<vmem>>, vector<32x1xf32>
    %13 = vector.broadcast %12 : vector<32x1xf32> to vector<32x128xf32>
    %14 = arith.addf %11, %13 : vector<32x128xf32>
    %cst_10 = arith.constant 0.000000e+00 : f32
    %15 = vector.broadcast %cst_10 : f32 to vector<32x128xf32>
    %16 = arith.maximumf %14, %15 : vector<32x128xf32>
    %c0_11 = arith.constant 0 : index
    %c0_12 = arith.constant 0 : index
    %17 = vector.load %arg6[%c0_11, %c0_12] : memref<1x32xf32, #tpu.memory_space<vmem>>, vector<1x32xf32>
    %cst_13 = arith.constant dense<0.000000e+00> : vector<1x128xf32>
    %18 = tpu.matmul %17, %16, %cst_13 {dimension_numbers = #tpu.dot_dimension_numbers<[1], [0], [0], [1], [0, 0, 1, 1], [], []>} : vector<1x32xf32>, vector<32x128xf32>, vector<1x128xf32> -> vector<1x128xf32>
    %c0_14 = arith.constant 0 : index
    %c0_15 = arith.constant 0 : index
    %19 = vector.load %arg7[%c0_14, %c0_15] : memref<1x1xf32, #tpu.memory_space<vmem>>, vector<1x1xf32>
    %20 = vector.broadcast %19 : vector<1x1xf32> to vector<1x128xf32>
    %21 = arith.addf %18, %20 : vector<1x128xf32>
    %c0_16 = arith.constant 0 : index
    %c0_17 = arith.constant 0 : index
    %22 = vector.load %arg8[%c0_16, %c0_17] : memref<1x128xf32, #tpu.memory_space<vmem>>, vector<1x128xf32>
    tpu.vector_store %arg8[%c0_16, %c0_17], %21 {strides = array<i32>} : memref<1x128xf32, #tpu.memory_space<vmem>>, vector<1x128xf32>,
    return
  }
  func.func @transform_0(%arg0: i32) -> (i32, i32) {
    %c0_i32 = arith.constant 0 : i32
    %c0_i32_0 = arith.constant 0 : i32
    return %c0_i32, %arg0 : i32, i32
  }
  func.func @transform_1(%arg0: i32) -> (i32, i32) {
    %c0_i32 = arith.constant 0 : i32
    %c0_i32_0 = arith.constant 0 : i32
    %c0_i32_1 = arith.constant 0 : i32
    return %c0_i32, %c0_i32_0 : i32, i32
  }
  func.func @transform_2(%arg0: i32) -> (i32, i32) {
    %c0_i32 = arith.constant 0 : i32
    %c0_i32_0 = arith.constant 0 : i32
    %c0_i32_1 = arith.constant 0 : i32
    return %c0_i32, %c0_i32_0 : i32, i32
  }
  func.func @transform_3(%arg0: i32) -> (i32, i32) {
    %c0_i32 = arith.constant 0 : i32
    %c0_i32_0 = arith.constant 0 : i32
    %c0_i32_1 = arith.constant 0 : i32
    return %c0_i32, %c0_i32_0 : i32, i32
  }
  func.func @transform_4(%arg0: i32) -> (i32, i32) {
    %c0_i32 = arith.constant 0 : i32
    %c0_i32_0 = arith.constant 0 : i32
    %c0_i32_1 = arith.constant 0 : i32
    return %c0_i32, %c0_i32_0 : i32, i32
  }
  func.func @transform_5(%arg0: i32) -> (i32, i32) {
    %c0_i32 = arith.constant 0 : i32
    %c0_i32_0 = arith.constant 0 : i32
    %c0_i32_1 = arith.constant 0 : i32
    return %c0_i32, %c0_i32_0 : i32, i32
  }
  func.func @transform_6(%arg0: i32) -> (i32, i32) {
    %c0_i32 = arith.constant 0 : i32
    %c0_i32_0 = arith.constant 0 : i32
    %c0_i32_1 = arith.constant 0 : i32
    return %c0_i32, %c0_i32_0 : i32, i32
  }
  func.func @transform_7(%arg0: i32) -> (i32, i32) {
    %c0_i32 = arith.constant 0 : i32
    %c0_i32_0 = arith.constant 0 : i32
    return %c0_i32, %arg0 : i32, i32
  }
}

</mosaic_0001>

<llo_original>
// kernel: simple_interpolator_forward.1
$region0: #{simple_interpolator_forward.1}
  #allocation0 [shape = 'u32[]', space=smem, size = 0x4, offset = 0x4, fixed_abs, tag = 'smem constant byte address 0x4 - core index']
  #allocation1 [shape = 'u32[72,128]{1,0:T(1,128)}', space=vmem, size = 0x9000, scoped, tag = 'internal scratch']
  #allocation2 [shape = 'f32[1,1]{1,0:T(1,128)S(1)}', space=vmem, size = 0x200, scoped, tag = 'scoped memory for simple_interpolator_forward.1']
  %s0 = inlined_call_operand.vmem [shape: f32[1,128], index: 0, kind: input, shape index: {}]
  %s1 = inlined_call_operand.vmem [shape: f32[16,1], index: 1, kind: input, shape index: {}]
  %s2 = inlined_call_operand.vmem [shape: f32[16,1], index: 2, kind: input, shape index: {}]
  %s3 = inlined_call_operand.vmem [shape: f32[32,16], index: 3, kind: input, shape index: {}]
  %s4 = inlined_call_operand.vmem [shape: f32[32,1], index: 4, kind: input, shape index: {}]
  %s5 = inlined_call_operand.vmem [shape: f32[1,32], index: 5, kind: input, shape index: {}]
  %s6 = inlined_call_operand.<no memory space> [shape: f32[1,1], index: 6, kind: input, shape index: {}]
  %s7 = inlined_call_operand.vmem [shape: f32[1,128], index: 7, kind: output, shape index: {}]
  %s8 = sld [smem:[#allocation0]]
  $region38: #{simple_interpolator_forward.1} parent=0
    _
  %s10 = ssub.s32 1, %s8
  %s11 = scalar_select 0, %s10, %s8
  %v12 = vstv %s6
  %13 = vst [vmem:[#allocation2] sm:$0x1] %v12
  // Predicated region
  $region2: #{simple_interpolator_forward.1} parent=0 // pred_check
    _
  $region3: #{simple_interpolator_forward.1} parent=0 // pred_check_branch
    %15 = sbr.rel (0) target = $region5
  $region4: #{simple_interpolator_forward.1} parent=0 // pred_region
    _
  $region5: #{simple_interpolator_forward.1} parent=0 // pred_fallthru
    _
  // Predicated region
  $region6: #{simple_interpolator_forward.1} parent=0 // pred_check
    _
  $region7: #{simple_interpolator_forward.1} parent=0 // pred_check_branch
    %17 = sbr.rel (0) target = $region9
  $region8: #{simple_interpolator_forward.1} parent=0 // pred_region
    _
  $region9: #{simple_interpolator_forward.1} parent=0 // pred_fallthru
    _
  // Predicated region
  $region10: #{simple_interpolator_forward.1} parent=0 // pred_check
    _
  $region11: #{simple_interpolator_forward.1} parent=0 // pred_check_branch
    %19 = sbr.rel (0) target = $region13
  $region12: #{simple_interpolator_forward.1} parent=0 // pred_region
    _
  $region13: #{simple_interpolator_forward.1} parent=0 // pred_fallthru
    _
  // Predicated region
  $region14: #{simple_interpolator_forward.1} parent=0 // pred_check
    _
  $region15: #{simple_interpolator_forward.1} parent=0 // pred_check_branch
    %21 = sbr.rel (0) target = $region17
  $region16: #{simple_interpolator_forward.1} parent=0 // pred_region
    _
  $region17: #{simple_interpolator_forward.1} parent=0 // pred_fallthru
    _
  // Predicated region
  $region18: #{simple_interpolator_forward.1} parent=0 // pred_check
    _
  $region19: #{simple_interpolator_forward.1} parent=0 // pred_check_branch
    %23 = sbr.rel (0) target = $region21
  $region20: #{simple_interpolator_forward.1} parent=0 // pred_region
    _
  $region21: #{simple_interpolator_forward.1} parent=0 // pred_fallthru
    _
  // Predicated region
  $region22: #{simple_interpolator_forward.1} parent=0 // pred_check
    _
  $region23: #{simple_interpolator_forward.1} parent=0 // pred_check_branch
    %25 = sbr.rel (0) target = $region25
  $region24: #{simple_interpolator_forward.1} parent=0 // pred_region
    _
  $region25: #{simple_interpolator_forward.1} parent=0 // pred_fallthru
    _
  // Predicated region
  $region26: #{simple_interpolator_forward.1} parent=0 // pred_check
    _
  $region27: #{simple_interpolator_forward.1} parent=0 // pred_check_branch
    %27 = sbr.rel (0) target = $region29
  $region28: #{simple_interpolator_forward.1} parent=0 // pred_region
    _
  $region29: #{simple_interpolator_forward.1} parent=0 // pred_fallthru
    _
  %v28 = vld [vmem:[%s0] sm:$0x1]
  %v29 = vld [vmem:[%s1] sm:$0xff]
  %v30 = vld [vmem:[%s1 + $0x8] sm:$0xff]
  %32 = vset.pattern.permute.xlu0 0
  %33 = vperm.xlu0 %32, %v29
  %v34 = vpop.permute.xlu0 %33
  %37 = vset.pattern.permute.xlu0 0
  %38 = vperm.xlu0 %37, %v30
  %v39 = vpop.permute.xlu0 %38
  %v42 = vperm.slane %v28, 0
  %v44 = vmul.f32 %v34, %v42
  %v45 = vmul.f32 %v39, %v42
  %v46 = vld [vmem:[%s2] sm:$0xff]
  %v47 = vld [vmem:[%s2 + $0x8] sm:$0xff]
  %49 = vset.pattern.permute.xlu0 0
  %50 = vperm.xlu0 %49, %v46
  %v51 = vpop.permute.xlu0 %50
  %54 = vset.pattern.permute.xlu0 0
  %55 = vperm.xlu0 %54, %v47
  %v56 = vpop.permute.xlu0 %55
  %v58 = vadd.f32 %v44, %v51
  %v59 = vadd.f32 %v45, %v56
  %v60 = vmax.f32 %v58, 0.0
  %v61 = vmax.f32 %v59, 0.0
  %v62 = vld [vmem:[%s3] sm:$0xff]
  %v63 = vld [vmem:[%s3 + $0x8] sm:$0xff]
  %v64 = vld [vmem:[%s3 + $0x10] sm:$0xff]
  %v65 = vld [vmem:[%s3 + $0x18] sm:$0xff]
  %v66 = vld [vmem:[%s4] sm:$0xff]
  %v67 = vld [vmem:[%s4 + $0x8] sm:$0xff]
  %v68 = vld [vmem:[%s4 + $0x10] sm:$0xff]
  %v69 = vld [vmem:[%s4 + $0x18] sm:$0xff]
  %71 = vset.pattern.permute.xlu0 0
  %72 = vperm.xlu0 %71, %v66
  %v73 = vpop.permute.xlu0 %72
  %76 = vset.pattern.permute.xlu0 0
  %77 = vperm.xlu0 %76, %v67
  %v78 = vpop.permute.xlu0 %77
  %81 = vset.pattern.permute.xlu0 0
  %82 = vperm.xlu0 %81, %v68
  %v83 = vpop.permute.xlu0 %82
  %86 = vset.pattern.permute.xlu0 0
  %87 = vperm.xlu0 %86, %v69
  %v88 = vpop.permute.xlu0 %87
  %vm90 = vcmask 130048
  %v92 = vsel %vm90, %v62, 0
  %v95 = vsel %vm90, %v63, 0
  %v98 = vsel %vm90, %v64, 0
  %v101 = vsel %vm90, %v65, 0
  %103 = vmatpush.msra.mxu0 0.0
  %104 = vmatpush.msra.mxu0 0.0
  %105 = vmatpush.msra.mxu0 0.0
  %106 = vmatpush.msra.mxu0 0.0
  %107 = vmatpush.msra.mxu0 0.0
  %108 = vmatpush.msra.mxu0 0.0
  %109 = vmatpush.msra.mxu0 0.0
  %110 = vmatpush.msra.mxu0 0.0
  %111 = vmatpush.msra.mxu0 0.0
  %112 = vmatpush.msra.mxu0 0.0
  %113 = vmatpush.msra.mxu0 0.0
  %114 = vmatpush.msra.mxu0 0.0
  %115 = vmatpush.msra.mxu0 0.0
  %116 = vmatpush.msra.mxu0 0.0
  %117 = vmatpush.msra.mxu0 %v61
  %118 = vmatpush.msra.mxu0 %v60
  %119 = vmatmul.f32.gmra.mxu0 %v92
  %v120 = vpop.f32.mrf.mxu0
  %v121 = vadd.f32 %v73, %v120
  %122 = vmatmul.f32.gmra.mxu0 %v95
  %v123 = vpop.f32.mrf.mxu0
  %v124 = vadd.f32 %v78, %v123
  %125 = vmatmul.f32.gmra.mxu0 %v98
  %v126 = vpop.f32.mrf.mxu0
  %v127 = vadd.f32 %v83, %v126
  %128 = vmatmul.f32.gmra.mxu0 %v101
  %v129 = vpop.f32.mrf.mxu0
  %v130 = vadd.f32 %v88, %v129
  %131 = vdwg.mxu0
  %v132 = vmax.f32 %v121, 0.0
  %v133 = vmax.f32 %v124, 0.0
  %v134 = vmax.f32 %v127, 0.0
  %v135 = vmax.f32 %v130, 0.0
  %v136 = vld [vmem:[%s5] sm:$0x1]
  %v137 = vld [vmem:[#allocation2] sm:$0x1]
  %139 = vset.pattern.permute.xlu0 0
  %140 = vperm.xlu0 %139, %v137
  %v141 = vpop.permute.xlu0 %140
  %v143 = vperm.slane %v141, 0
  %vm144 = vcmask 261120
  %v146 = vsel %vm144, %v136, 0
  %148 = vmatpush.msra.mxu0 0.0
  %149 = vmatpush.msra.mxu0 0.0
  %150 = vmatpush.msra.mxu0 0.0
  %151 = vmatpush.msra.mxu0 0.0
  %152 = vmatpush.msra.mxu0 0.0
  %153 = vmatpush.msra.mxu0 0.0
  %154 = vmatpush.msra.mxu0 0.0
  %155 = vmatpush.msra.mxu0 0.0
  %156 = vmatpush.msra.mxu0 0.0
  %157 = vmatpush.msra.mxu0 0.0
  %158 = vmatpush.msra.mxu0 0.0
  %159 = vmatpush.msra.mxu0 0.0
  %160 = vmatpush.msra.mxu0 %v135
  %161 = vmatpush.msra.mxu0 %v134
  %162 = vmatpush.msra.mxu0 %v133
  %163 = vmatpush.msra.mxu0 %v132
  %164 = vmatmul.f32.gmra.mxu0 %v146
  %v165 = vpop.f32.mrf.mxu0
  %v166 = vadd.f32 %v143, %v165
  %167 = vdwg.mxu0
  %168 = vst [vmem:[%s7] sm:$0x1] %v166
  // Predicated region
  $region30: #{simple_interpolator_forward.1} parent=0 // pred_check
    _
  $region31: #{simple_interpolator_forward.1} parent=0 // pred_check_branch
    %170 = sbr.rel (0) target = $region33
  $region32: #{simple_interpolator_forward.1} parent=0 // pred_region
    _
  $region33: #{simple_interpolator_forward.1} parent=0 // pred_fallthru
    _
  // Predicated region
  $region34: #{simple_interpolator_forward.1} parent=0 // pred_check
    _
  $region35: #{simple_interpolator_forward.1} parent=0 // pred_check_branch
    %172 = sbr.rel (0) target = $region37
  $region36: #{simple_interpolator_forward.1} parent=0 // pred_region
    _
  $region37: #{simple_interpolator_forward.1} parent=0 // pred_fallthru
    _

</llo_original>
